<compile_context>
chip_gen: v5e
topology: v5e:2x2
jax: 0.10.0
libtpu: 0.0.40
codegen_flags: <defaults>
</compile_context>

<pallas_src>
import jax
import jax.numpy as jnp
from jax.experimental import pallas as pl
from jax.experimental.pallas import tpu as pltpu


def _pfplus_kernel(x_ref, p_ref, o_ref):
    x = x_ref[...]                  # (tile_rows, tile_cols)
    lam = p_ref[:, 0:1]             # (tile_rows, 1) -> broadcasts over lanes
    mu = p_ref[:, 1:2]              # (tile_rows, 1)
    lin = lam * x
    neg = x < 0
    # Safe denominator: the non-negative branch never uses the division, so
    # feed it 1.0 to avoid spurious inf/NaN in the discarded branch.
    denom = jnp.where(neg, 1.0 - mu * x, 1.0)
    rational = lin * pl.reciprocal(denom, approx=False)   # exact; EUP path
    o_ref[...] = jnp.where(neg, rational, lin)


def _pick_tiles(nc, hw, itemsize, target_block_bytes=4 * 1024 * 1024,
                max_lane=8192):
    """Pick a lane-dense, VMEM-friendly (tile_rows, tile_cols)."""
    if hw % 128 == 0:
        tile_cols = min(hw, max_lane)          # multiple of 128 -> unmasked vst
    else:
        # Full-dim rule keeps this legal; stores may be masked (perf only).
        tile_cols = hw
    target_rows = max(1, target_block_bytes // (tile_cols * itemsize))
    if target_rows >= nc or nc <= 8:
        tile_rows = nc                         # full-dim rule
    else:
        tile_rows = max(8, (target_rows // 8) * 8)   # f32 sublane rule
    return tile_rows, tile_cols


def pfplus(x, lambda_factor, mu_factor):
    """x: (N, C, H, W); lambda_factor, mu_factor: (1, C, 1, 1) or (1, 1, 1, 1)."""
    N, C, H, W = x.shape
    HW = H * W
    NC = N * C

    x2d = x.reshape(NC, HW)

    # Broadcast per-channel params to per-(batch, channel) rows and fuse
    # lam/mu into a single (NC, 2) side input -> one small param DMA per step.
    lam_rows = jnp.broadcast_to(lambda_factor, (1, C, 1, 1)).reshape(1, C)
    mu_rows = jnp.broadcast_to(mu_factor, (1, C, 1, 1)).reshape(1, C)
    lam_rows = jnp.broadcast_to(lam_rows, (N, C)).reshape(NC)
    mu_rows = jnp.broadcast_to(mu_rows, (N, C)).reshape(NC)
    params = jnp.stack([lam_rows, mu_rows], axis=-1).astype(x.dtype)  # (NC, 2)

    tile_rows, tile_cols = _pick_tiles(NC, HW, jnp.dtype(x.dtype).itemsize)
    grid = (pl.cdiv(NC, tile_rows), pl.cdiv(HW, tile_cols))

    out2d = pl.pallas_call(
        _pfplus_kernel,
        out_shape=jax.ShapeDtypeStruct((NC, HW), x.dtype),
        grid_spec=pltpu.PrefetchScalarGridSpec(
            num_scalar_prefetch=0,
            grid=grid,
            in_specs=[
                pl.BlockSpec((tile_rows, tile_cols), lambda i, j: (i, j)),
                pl.BlockSpec((tile_rows, 2), lambda i, j: (i, 0)),
            ],
            out_specs=pl.BlockSpec((tile_rows, tile_cols), lambda i, j: (i, j)),
        ),
        compiler_params=pltpu.CompilerParams(
            dimension_semantics=("parallel", "parallel"),
            vmem_limit_bytes=32 * 1024 * 1024,
        ),
    )(x2d, params)

    return out2d.reshape(N, C, H, W)


def pfplus_reference(x, lambda_factor, mu_factor):
    lam = lambda_factor  # (1, C, 1, 1)
    mu = mu_factor
    lin = lam * x
    return jnp.where(x < 0, lin / (1.0 - mu * x), lin)


if __name__ == "__main__":
    key = jax.random.PRNGKey(0)
    N, C, H, W = 2, 4, 16, 16

    kx, kl, km = jax.random.split(key, 3)
    x = jax.random.normal(kx, (N, C, H, W), dtype=jnp.float32)

    # Parameter init matches the module: constant 1.0, shape (1, C, 1, 1).
    lambda_factor = jnp.ones((1, C, 1, 1), dtype=jnp.float32)
    mu_factor = jnp.ones((1, C, 1, 1), dtype=jnp.float32)

    out = pfplus(x, lambda_factor, mu_factor)
    out = jax.block_until_ready(out)
    ref = pfplus_reference(x, lambda_factor, mu_factor)
    assert out.shape == (N, C, H, W)
    assert jnp.allclose(out, ref, atol=1e-5, rtol=1e-5)

    # Extra check with non-trivial per-channel params (exercises broadcast).
    lam2 = 0.5 + jax.random.uniform(kl, (1, C, 1, 1), dtype=jnp.float32)
    mu2 = 0.5 + jax.random.uniform(km, (1, C, 1, 1), dtype=jnp.float32)
    out2 = jax.block_until_ready(pfplus(x, lam2, mu2))
    ref2 = pfplus_reference(x, lam2, mu2)
    assert jnp.allclose(out2, ref2, atol=1e-5, rtol=1e-5)

    # Scalar-parameter variant (in_channels=None path of the module).
    lam3 = jnp.full((1, 1, 1, 1), 1.3, dtype=jnp.float32)
    mu3 = jnp.full((1, 1, 1, 1), 0.7, dtype=jnp.float32)
    out3 = jax.block_until_ready(pfplus(x, lam3, mu3))
    ref3 = pfplus_reference(x, lam3, mu3)
    assert jnp.allclose(out3, ref3, atol=1e-5, rtol=1e-5)

    print("KERNEL_OK")
</pallas_src>

<mosaic_0001>
module attributes {stable_mosaic.version = 11 : i64} {
  func.func @_pfplus_kernel(%arg0: i32, %arg1: i32, %arg2: memref<8x256xf32, #tpu.memory_space<vmem>>, %arg3: memref<8x2xf32, #tpu.memory_space<vmem>>, %arg4: memref<8x256xf32, #tpu.memory_space<vmem>>) attributes {dimension_semantics = [#tpu.dimension_semantics<parallel>, #tpu.dimension_semantics<parallel>], iteration_bounds = array<i64: 1, 1>, scalar_prefetch = 0 : i64, scratch_operands = 0 : i64, tpu.core_type = #tpu.core_type<tc>, window_params = [{transform_indices = @transform_0, window_bounds = array<i64: 8, 256>}, {transform_indices = @transform_1, window_bounds = array<i64: 8, 2>}, {transform_indices = @transform_2, window_bounds = array<i64: 8, 256>}]} {
    %c0 = arith.constant 0 : index
    %c0_0 = arith.constant 0 : index
    %0 = vector.load %arg2[%c0, %c0_0] : memref<8x256xf32, #tpu.memory_space<vmem>>, vector<8x256xf32>
    %c0_1 = arith.constant 0 : index
    %c0_2 = arith.constant 0 : index
    %1 = vector.load %arg3[%c0_1, %c0_2] : memref<8x2xf32, #tpu.memory_space<vmem>>, vector<8x1xf32>
    %c0_3 = arith.constant 0 : index
    %c1 = arith.constant 1 : index
    %2 = vector.load %arg3[%c0_3, %c1] : memref<8x2xf32, #tpu.memory_space<vmem>>, vector<8x1xf32>
    %3 = vector.broadcast %1 : vector<8x1xf32> to vector<8x256xf32>
    %4 = arith.mulf %3, %0 : vector<8x256xf32>
    %cst = arith.constant 0.000000e+00 : f32
    %5 = vector.broadcast %cst : f32 to vector<8x256xf32>
    %6 = arith.cmpf olt, %0, %5 : vector<8x256xf32>
    %7 = vector.broadcast %2 : vector<8x1xf32> to vector<8x256xf32>
    %8 = arith.mulf %7, %0 : vector<8x256xf32>
    %cst_4 = arith.constant 1.000000e+00 : f32
    %9 = vector.broadcast %cst_4 : f32 to vector<8x256xf32>
    %10 = arith.subf %9, %8 : vector<8x256xf32>
    %cst_5 = arith.constant 1.000000e+00 : f32
    %11 = vector.broadcast %cst_5 : f32 to vector<8x256xf32>
    %12 = arith.select %6, %10, %11 : vector<8x256xi1>, vector<8x256xf32>
    %13 = tpu.reciprocal %12 : vector<8x256xf32> -> vector<8x256xf32>
    %14 = arith.mulf %4, %13 : vector<8x256xf32>
    %15 = arith.select %6, %14, %4 : vector<8x256xi1>, vector<8x256xf32>
    %c0_6 = arith.constant 0 : index
    %c0_7 = arith.constant 0 : index
    %16 = vector.load %arg4[%c0_6, %c0_7] : memref<8x256xf32, #tpu.memory_space<vmem>>, vector<8x256xf32>
    tpu.vector_store %arg4[%c0_6, %c0_7], %15 {strides = array<i32>} : memref<8x256xf32, #tpu.memory_space<vmem>>, vector<8x256xf32>,
    return
  }
  func.func @transform_0(%arg0: i32, %arg1: i32) -> (i32, i32) {
    %c0_i32 = arith.constant 0 : i32
    return %arg0, %arg1 : i32, i32
  }
  func.func @transform_1(%arg0: i32, %arg1: i32) -> (i32, i32) {
    %c0_i32 = arith.constant 0 : i32
    %c0_i32_0 = arith.constant 0 : i32
    return %arg0, %c0_i32 : i32, i32
  }
  func.func @transform_2(%arg0: i32, %arg1: i32) -> (i32, i32) {
    %c0_i32 = arith.constant 0 : i32
    return %arg0, %arg1 : i32, i32
  }
}

</mosaic_0001>

<llo_original>
// kernel: tpu_custom_call.1
$region0: #{tpu_custom_call.1}
  #allocation0 [shape = 'u32[]', space=smem, size = 0x4, offset = 0x4, fixed_abs, tag = 'smem constant byte address 0x4 - core index']
  #allocation1 [shape = 'u32[72,128]{1,0:T(1,128)}', space=vmem, size = 0x9000, scoped, tag = 'internal scratch']
  %s0 = inlined_call_operand.hbm [shape: f32[8,256], index: 0, kind: input, shape index: {}]
  %s1 = inlined_call_operand.vmem [shape: f32[8,2], index: 1, kind: input, shape index: {}]
  %s2 = inlined_call_operand.hbm [shape: f32[8,256], index: 2, kind: output, shape index: {}]
  %s3 = sld [smem:[#allocation0]]
  $region22: #{tpu_custom_call.1} parent=0
    _
  %s5 = ssub.s32 1, %s3
  %s6 = scalar_select 0, %s5, %s3
  $region1: #{tpu_custom_call.1} parent=0
    #allocation2 [shape = 'u8[8192]{0}', space=vmem, size = 0x2000, scoped, tag = 'input window, operand 0, single buffered']
    #allocation3 [shape = 's32[1]{0}', space=sflag, size = 0x4, scoped, tag = 'scoped memory for tpu_custom_call.1']
    #allocation4 [shape = 's32[1]{0}', space=sflag, size = 0x4, scoped, tag = 'scoped memory for tpu_custom_call.1']
    #allocation5 [shape = 'u8[8192]{0}', space=vmem, size = 0x2000, scoped, tag = 'output window, operand 0, single buffered']
    %7 = vsyncpa [#allocation3], 0
    %8 = vsyncpa [#allocation4], 0
    // Predicated region
    $region2: #{tpu_custom_call.1} parent=1 // pred_check
      _
    $region3: #{tpu_custom_call.1} parent=1 // pred_check_branch
      %10 = sbr.rel (0) target = $region5
    $region4: #{tpu_custom_call.1} parent=1 // pred_region
      %12 = vsyncadd [#allocation3], 0
      %s14 = sshll.u32 %s0, 4
      %s15 = int_to_ptr.hbm [resolvable:$true] %s14
      %s16 = sshll.u32 [#allocation2], 4
      %s17 = int_to_ptr.vmem [resolvable:$true] %s16
      %19 = dma.hbm_to_vmem [thread:$0]  %s15, 256, %s17, [#allocation3]
    $region5: #{tpu_custom_call.1} parent=1 // pred_fallthru
      _
    // Predicated region
    $region6: #{tpu_custom_call.1} parent=1 // pred_check
      _
    $region7: #{tpu_custom_call.1} parent=1 // pred_check_branch
      %21 = sbr.rel (0) target = $region9
    $region8: #{tpu_custom_call.1} parent=1 // pred_region
      _
    $region9: #{tpu_custom_call.1} parent=1 // pred_fallthru
      _
    // Predicated region
    $region10: #{tpu_custom_call.1} parent=1 // pred_check
      _
    $region11: #{tpu_custom_call.1} parent=1 // pred_check_branch
      %23 = sbr.rel (0) target = $region13
    $region12: #{tpu_custom_call.1} parent=1 // pred_region
      %25 = dma.done [#allocation3], 256
    $region13: #{tpu_custom_call.1} parent=1 // pred_fallthru
      _
    %v26 = vld [vmem:[#allocation2] sm:$0xff]
    %v27 = vld [vmem:[#allocation2 + $0x8] sm:$0xff]
    %v28 = vld [vmem:[%s1] sm:$0xff]
    %30 = vset.pattern.permute.xlu0 0
    %31 = vperm.xlu0 %30, %v28
    %v32 = vpop.permute.xlu0 %31
    %v34 = vmul.f32 %v32, %v26
    %v35 = vmul.f32 %v32, %v27
    %vm36 = vcmp.lt.f32.partialorder %v26, 0.0
    %vm37 = vcmp.lt.f32.partialorder %v27, 0.0
    %38 = vset.pattern.permute.xlu0 1
    %39 = vperm.xlu0 %38, %v28
    %v40 = vpop.permute.xlu0 %39
    %v42 = vmul.f32 %v40, %v26
    %v43 = vmul.f32 %v40, %v27
    %v44 = vsub.f32 1.0, %v42
    %v45 = vsub.f32 1.0, %v43
    %v46 = vsel %vm36, %v44, 1.0
    %v47 = vsel %vm37, %v45, 1.0
    %v48 = vrcp.pop %v46
    %v49 = vmul.f32 %v46, %v48
    %v50 = vsub.f32 1.0, %v49
    %v51 = vmul.f32 %v48, %v50
    %v52 = vadd.f32 %v48, %v51
    %vm53 = vweird.f32 %v46
    %vm54 = vweird.f32 %v48
    %vm55 = vmor %vm53, %vm54
    %v56 = vsel %vm55, %v48, %v52
    %v57 = vand.u32 2147483647, %v46
    %vm58 = vcmp.eq.f32.partialorder %v57, 8.507059e+37
    %v59 = vand.u32 %v46, 2147483648
    %v60 = vor.u32 1.1754944e-38, %v59
    %v61 = vsel %vm58, %v60, %v56
    %v62 = vrcp.pop %v47
    %v63 = vmul.f32 %v47, %v62
    %v64 = vsub.f32 1.0, %v63
    %v65 = vmul.f32 %v62, %v64
    %v66 = vadd.f32 %v62, %v65
    %vm67 = vweird.f32 %v47
    %vm68 = vweird.f32 %v62
    %vm69 = vmor %vm67, %vm68
    %v70 = vsel %vm69, %v62, %v66
    %v71 = vand.u32 2147483647, %v47
    %vm72 = vcmp.eq.f32.partialorder %v71, 8.507059e+37
    %v73 = vand.u32 %v47, 2147483648
    %v74 = vor.u32 1.1754944e-38, %v73
    %v75 = vsel %vm72, %v74, %v70
    %v76 = vmul.f32 %v34, %v61
    %v77 = vmul.f32 %v35, %v75
    %v78 = vsel %vm36, %v76, %v34
    %v79 = vsel %vm37, %v77, %v35
    %80 = vst [vmem:[#allocation5] sm:$0xff] %v78
    %81 = vst [vmem:[#allocation5 + $0x8] sm:$0xff] %v79
    // Predicated region
    $region14: #{tpu_custom_call.1} parent=1 // pred_check
      _
    $region15: #{tpu_custom_call.1} parent=1 // pred_check_branch
      %83 = sbr.rel (0) target = $region17
    $region16: #{tpu_custom_call.1} parent=1 // pred_region
      %85 = vsyncadd [#allocation4], 0
      %s87 = sshll.u32 [#allocation5], 4
      %s88 = int_to_ptr.vmem [resolvable:$true] %s87
      %s89 = sshll.u32 %s2, 4
      %s90 = int_to_ptr.hbm [resolvable:$true] %s89
      %92 = dma.vmem_to_hbm [thread:$0]  %s88, 256, %s90, [#allocation4]
    $region17: #{tpu_custom_call.1} parent=1 // pred_fallthru
      _
    // Predicated region
    $region18: #{tpu_custom_call.1} parent=1 // pred_check
      _
    $region19: #{tpu_custom_call.1} parent=1 // pred_check_branch
      %94 = sbr.rel (0) target = $region21
    $region20: #{tpu_custom_call.1} parent=1 // pred_region
      %96 = dma.done [#allocation4], 256
    $region21: #{tpu_custom_call.1} parent=1 // pred_fallthru
      _
    %97 = vsyncpa [#allocation3], 1
    %98 = vsyncpa [#allocation4], 1

</llo_original>
